<compile_context>
chip_gen: v7x
topology: tpu7x:2x2x1
jax: 0.10.0
libtpu: 0.0.40
codegen_flags: <defaults>
</compile_context>

<pallas_src>
import functools

import jax
import jax.numpy as jnp
from jax.experimental import pallas as pl
from jax.experimental.pallas import tpu as pltpu

_LANE = 128
_TARGET_BLOCK_BYTES = 4 * 1024 * 1024     # per input, per pipeline buffer
_VMEM_LIMIT_BYTES = 32 * 1024 * 1024      # <= physical VMEM headroom on v5e/v6e/v7x


def _round_up(x: int, m: int) -> int:
    return ((x + m - 1) // m) * m


def _sublane_multiple(dtype) -> int:
    # Native sublane tile of the second-to-last dim: 8 (f32), 16 (bf16), 32 (int8/fp8).
    itemsize = jnp.dtype(dtype).itemsize
    return 8 * max(1, 4 // max(1, itemsize))


def _l1_kernel(pred_ref, gt_ref, out_ref, *, tile_m: int, tiles_per_split: int,
               n_tiles: int, valid_rows: int, needs_mask: bool, two_d_grid: bool):
    if two_d_grid:
        s = pl.program_id(0)
        t = pl.program_id(1)
        logical_tile = s * tiles_per_split + t
    else:
        t = pl.program_id(0)
        logical_tile = t

    @pl.when(t == 0)
    def _():
        out_ref[...] = jnp.zeros_like(out_ref)

    # Inputs are DMA'd in their native dtype; cast to f32 in-kernel.
    diff = jnp.abs(pred_ref[...].astype(jnp.float32) - gt_ref[...].astype(jnp.float32))

    def accumulate(d):
        if tile_m % 64 == 0:
            # Two-stage tree reduce: 8 independent accumulator chains of length
            # tile_m/64, then 7 adds -> keeps VALU slots busy instead of one long
            # dependent vadd chain. The reshape stays on (8,128) tile boundaries
            # (free relayout).
            part = d.reshape(tile_m // 64, 8, 8, _LANE).sum(axis=0)
            out_ref[...] += part.sum(axis=0)
        else:
            # Tiny-tile fallback (tile_m is always a multiple of 8).
            out_ref[...] += d.reshape(tile_m // 8, 8, _LANE).sum(axis=0)

    if needs_mask:
        # Only the boundary / duplicate (clamped) tiles need masking; interior
        # steady-state tiles take the unmasked path (no iota/cmp/select filler).
        boundary = logical_tile >= n_tiles - 1

        @pl.when(logical_tile < n_tiles - 1)
        def _():
            accumulate(diff)

        @pl.when(boundary)
        def _():
            row_ids = logical_tile * tile_m + jax.lax.broadcasted_iota(
                jnp.int32, (tile_m, _LANE), 0)
            accumulate(jnp.where(row_ids < valid_rows, diff, 0.0))
    else:
        accumulate(diff)


def l1_loss(pred: jax.Array, gt: jax.Array, *, block_bytes: int = _TARGET_BLOCK_BYTES,
            n_splits: int = 1, core_parallel: bool = False) -> jax.Array:
    """Pallas equivalent of L1Loss.forward: sum(|pred - gt|) / (h * w).

    n_splits > 1 adds a leading grid axis that splits the row range; pass
    core_parallel=True on v7x (n_splits = number of TensorCores) to shard it
    across cores. On single-TC chips keep the default n_splits=1.
    """
    b, c, h, w = gt.shape
    total = b * c * h * w

    itemsize = max(jnp.dtype(pred.dtype).itemsize, jnp.dtype(gt.dtype).itemsize)
    sub = max(_sublane_multiple(pred.dtype), _sublane_multiple(gt.dtype))

    # Lane-dense (rows, 128) view in native dtype. Zero-copy when total % 128 == 0.
    m_rows = -(-total // _LANE)
    padded_total = m_rows * _LANE

    def _as_rows(x):
        flat = x.reshape(-1)
        if padded_total != total:
            # |0 - 0| == 0, so zero-padding both inputs is loss-neutral.
            # TODO(synk): this pad materializes one full HBM copy on ragged sizes
            # (total % 128 != 0); a flat 1-D BlockSpec + in-kernel element-index
            # mask would remove it but needs validation of 1-D VMEM layouts.
            flat = jnp.pad(flat, (0, padded_total - total))
        return flat.reshape(m_rows, _LANE)

    p2 = _as_rows(pred)
    g2 = _as_rows(gt)

    # ~block_bytes per input block regardless of dtype; shrink for tiny inputs.
    target_rows = _round_up(max(block_bytes // (_LANE * itemsize), sub), sub)
    tile_m = _round_up(min(target_rows, _round_up(m_rows, sub)), sub)

    n_tiles = -(-m_rows // tile_m)
    n_splits = max(1, min(int(n_splits), n_tiles))
    tiles_per_split = -(-n_tiles // n_splits)
    coverage = n_splits * tiles_per_split
    needs_mask = (m_rows % tile_m != 0) or (coverage > n_tiles)
    two_d_grid = n_splits > 1

    kernel = functools.partial(
        _l1_kernel,
        tile_m=tile_m,
        tiles_per_split=tiles_per_split,
        n_tiles=n_tiles,
        valid_rows=m_rows,
        needs_mask=needs_mask,
        two_d_grid=two_d_grid,
    )

    cost = pl.CostEstimate(
        flops=3 * padded_total,
        transcendentals=0,
        bytes_accessed=padded_total * (jnp.dtype(pred.dtype).itemsize
                                       + jnp.dtype(gt.dtype).itemsize)
        + n_splits * 8 * _LANE * 4,
    )

    if two_d_grid:
        def in_map(s, t):
            # Clamp so DMAs never target a fully out-of-bounds block; clamped
            # duplicate tiles are fully zeroed by the boundary mask in-kernel.
            return (jnp.minimum(s * tiles_per_split + t, n_tiles - 1), 0)

        grid = (n_splits, tiles_per_split)
        in_specs = [pl.BlockSpec((tile_m, _LANE), in_map),
                    pl.BlockSpec((tile_m, _LANE), in_map)]
        out_specs = pl.BlockSpec((8, _LANE), lambda s, t: (s, 0))
        out_shape = jax.ShapeDtypeStruct((n_splits * 8, _LANE), jnp.float32)
        split_sem = pltpu.CORE_PARALLEL if core_parallel else "parallel"
        dim_sem = (split_sem, "arbitrary")
    else:
        grid = (n_tiles,)
        in_specs = [pl.BlockSpec((tile_m, _LANE), lambda t: (t, 0)),
                    pl.BlockSpec((tile_m, _LANE), lambda t: (t, 0))]
        out_specs = pl.BlockSpec((8, _LANE), lambda t: (0, 0))
        out_shape = jax.ShapeDtypeStruct((8, _LANE), jnp.float32)
        dim_sem = ("arbitrary",)

    partials = pl.pallas_call(
        kernel,
        out_shape=out_shape,
        grid_spec=pltpu.PrefetchScalarGridSpec(
            num_scalar_prefetch=0,
            grid=grid,
            in_specs=in_specs,
            out_specs=out_specs,
        ),
        compiler_params=pltpu.CompilerParams(
            dimension_semantics=dim_sem,
            vmem_limit_bytes=_VMEM_LIMIT_BYTES,
        ),
        cost_estimate=cost,
    )(p2, g2)

    # Final tiny cross-lane reduce + normalization (by h*w, matching the module).
    return jnp.sum(partials) / jnp.float32(h * w)


if __name__ == "__main__":
    key = jax.random.PRNGKey(0)
    k1, k2, k3, k4, k5, k6 = jax.random.split(key, 6)

    # 1) Small lane-aligned NCHW shape: zero-copy path, no masking, single tile.
    b, c, h, w = 2, 4, 16, 16
    pred = jax.random.normal(k1, (b, c, h, w), dtype=jnp.float32)
    gt = jax.random.normal(k2, (b, c, h, w), dtype=jnp.float32)
    loss = l1_loss(pred, gt)
    jax.block_until_ready(loss)
    ref = jnp.sum(jnp.abs(pred - gt)) / (h * w)
    assert jnp.allclose(loss, ref, rtol=1e-5, atol=1e-5), (loss, ref)

    # 2) Ragged shape (total % 128 != 0): exercises minimal pad + boundary mask.
    b2, c2, h2, w2 = 2, 3, 10, 10
    pred2 = jax.random.normal(k3, (b2, c2, h2, w2), dtype=jnp.float32)
    gt2 = jax.random.normal(k4, (b2, c2, h2, w2), dtype=jnp.float32)
    loss2 = l1_loss(pred2, gt2)
    jax.block_until_ready(loss2)
    ref2 = jnp.sum(jnp.abs(pred2 - gt2)) / (h2 * w2)
    assert jnp.allclose(loss2, ref2, rtol=1e-5, atol=1e-5), (loss2, ref2)

    # 3) Multi-tile grid with unmasked interior + masked boundary tile
    #    (small block_bytes override keeps shapes small).
    b3, c3, h3, w3 = 2, 2, 24, 128
    pred3 = jax.random.normal(k5, (b3, c3, h3, w3), dtype=jnp.float32)
    gt3 = jax.random.normal(k6, (b3, c3, h3, w3), dtype=jnp.float32)
    loss3 = l1_loss(pred3, gt3, block_bytes=64 * _LANE * 4)   # tile_m = 64 rows
    jax.block_until_ready(loss3)
    ref3 = jnp.sum(jnp.abs(pred3 - gt3)) / (h3 * w3)
    assert jnp.allclose(loss3, ref3, rtol=1e-5, atol=1e-5), (loss3, ref3)

    # 4) Opt-in 2-D split grid path (plain "parallel"; core_parallel is for v7x).
    loss4 = l1_loss(pred3, gt3, block_bytes=64 * _LANE * 4, n_splits=2)
    jax.block_until_ready(loss4)
    assert jnp.allclose(loss4, ref3, rtol=1e-5, atol=1e-5), (loss4, ref3)

    print("KERNEL_OK")
</pallas_src>

<mosaic_0001>
module attributes {stable_mosaic.version = 11 : i64} {
  func.func @_l1_kernel(%arg0: i32, %arg1: memref<16x128xf32, #tpu.memory_space<vmem>>, %arg2: memref<16x128xf32, #tpu.memory_space<vmem>>, %arg3: memref<8x128xf32, #tpu.memory_space<vmem>>) attributes {dimension_semantics = [#tpu.dimension_semantics<arbitrary>], iteration_bounds = array<i64: 1>, scalar_prefetch = 0 : i64, scratch_operands = 0 : i64, tpu.core_type = #tpu.core_type<tc>, window_params = [{transform_indices = @transform_0, window_bounds = array<i64: 16, 128>}, {transform_indices = @transform_1, window_bounds = array<i64: 16, 128>}, {pipeline_mode = #tpu.pipeline_mode<synchronous>, transform_indices = @transform_2, window_bounds = array<i64: 8, 128>}]} {
    %c0_i32 = arith.constant 0 : i32
    %0 = arith.cmpi eq, %arg0, %c0_i32 : i32
    %1 = arith.extui %0 : i1 to i32
    %c0_i32_0 = arith.constant 0 : i32
    %2 = arith.cmpi ne, %1, %c0_i32_0 : i32
    scf.if %2 {
      %cst_8 = arith.constant 0.000000e+00 : f32
      %12 = vector.broadcast %cst_8 : f32 to vector<8x128xf32>
      %c0_9 = arith.constant 0 : index
      %c0_10 = arith.constant 0 : index
      %13 = vector.load %arg3[%c0_9, %c0_10] : memref<8x128xf32, #tpu.memory_space<vmem>>, vector<8x128xf32>
      tpu.vector_store %arg3[%c0_9, %c0_10], %12 {strides = array<i32>} : memref<8x128xf32, #tpu.memory_space<vmem>>, vector<8x128xf32>,
    } else {
    }
    %c0 = arith.constant 0 : index
    %c0_1 = arith.constant 0 : index
    %3 = vector.load %arg1[%c0, %c0_1] : memref<16x128xf32, #tpu.memory_space<vmem>>, vector<16x128xf32>
    %c0_2 = arith.constant 0 : index
    %c0_3 = arith.constant 0 : index
    %4 = vector.load %arg2[%c0_2, %c0_3] : memref<16x128xf32, #tpu.memory_space<vmem>>, vector<16x128xf32>
    %5 = arith.subf %3, %4 : vector<16x128xf32>
    %6 = math.absf %5 : vector<16x128xf32>
    %c0_4 = arith.constant 0 : index
    %c0_5 = arith.constant 0 : index
    %7 = vector.load %arg3[%c0_4, %c0_5] : memref<8x128xf32, #tpu.memory_space<vmem>>, vector<8x128xf32>
    %8 = vector.shape_cast %6 : vector<16x128xf32> to vector<2x8x128xf32>
    %cst = arith.constant dense<0.000000e+00> : vector<8x128xf32>
    %9 = vector.multi_reduction <add>, %8, %cst [0] : vector<2x8x128xf32> to vector<8x128xf32>
    %10 = arith.addf %7, %9 : vector<8x128xf32>
    %c0_6 = arith.constant 0 : index
    %c0_7 = arith.constant 0 : index
    %11 = vector.load %arg3[%c0_6, %c0_7] : memref<8x128xf32, #tpu.memory_space<vmem>>, vector<8x128xf32>
    tpu.vector_store %arg3[%c0_6, %c0_7], %10 {strides = array<i32>} : memref<8x128xf32, #tpu.memory_space<vmem>>, vector<8x128xf32>,
    return
  }
  func.func @transform_0(%arg0: i32) -> (i32, i32) {
    %c0_i32 = arith.constant 0 : i32
    %c0_i32_0 = arith.constant 0 : i32
    return %arg0, %c0_i32 : i32, i32
  }
  func.func @transform_1(%arg0: i32) -> (i32, i32) {
    %c0_i32 = arith.constant 0 : i32
    %c0_i32_0 = arith.constant 0 : i32
    return %arg0, %c0_i32 : i32, i32
  }
  func.func @transform_2(%arg0: i32) -> (i32, i32) {
    %c0_i32 = arith.constant 0 : i32
    %c0_i32_0 = arith.constant 0 : i32
    %c0_i32_1 = arith.constant 0 : i32
    return %c0_i32, %c0_i32_0 : i32, i32
  }
}

</mosaic_0001>

<llo_original>
// kernel: tpu_custom_call.1
$region0: #{tpu_custom_call.1}
  #allocation0 [shape = 'u32[]', space=smem, size = 0x4, offset = 0x4, fixed_abs, tag = 'smem constant byte address 0x4 - core index']
  #allocation1 [shape = 'u32[144,128]{1,0:T(1,128)}', space=vmem, size = 0x12000, scoped, tag = 'internal scratch']
  %s0 = inlined_call_operand.hbm [shape: f32[16,128], index: 0, kind: input, shape index: {}]
  %s1 = inlined_call_operand.hbm [shape: f32[16,128], index: 1, kind: input, shape index: {}]
  %s2 = inlined_call_operand.hbm [shape: f32[8,128], index: 2, kind: output, shape index: {}]
  %s3 = sld [smem:[#allocation0]]
  $region30: #{tpu_custom_call.1} parent=0
    _
  %s5 = ssub.s32 1, %s3
  %s6 = scalar_select 0, %s5, %s3
  $region1: #{tpu_custom_call.1} parent=0
    #allocation2 [shape = 'u8[8192]{0}', space=vmem, size = 0x2000, scoped, tag = 'input window, operand 0, single buffered']
    #allocation3 [shape = 's32[1]{0}', space=sflag, size = 0x4, scoped, tag = 'scoped memory for tpu_custom_call.1']
    #allocation4 [shape = 's32[1]{0}', space=sflag, size = 0x4, scoped, tag = 'scoped memory for tpu_custom_call.1']
    #allocation5 [shape = 'u8[8192]{0}', space=vmem, size = 0x2000, scoped, tag = 'input window, operand 1, single buffered']
    #allocation6 [shape = 's32[1]{0}', space=sflag, size = 0x4, scoped, tag = 'scoped memory for tpu_custom_call.1']
    #allocation7 [shape = 'u8[4096]{0}', space=vmem, size = 0x1000, scoped, tag = 'output window, operand 0, single buffered']
    %7 = vsyncpa [#allocation3], 0
    %8 = vsyncpa [#allocation6], 0
    %9 = vsyncpa [#allocation4], 0
    // Predicated region
    $region2: #{tpu_custom_call.1} parent=1 // pred_check
      _
    $region3: #{tpu_custom_call.1} parent=1 // pred_check_branch
      %11 = sbr.rel (0) target = $region5
    $region4: #{tpu_custom_call.1} parent=1 // pred_region
      %s13 = ssub.s32 256, 256
      %14 = vsyncadd [#allocation3], %s13
      %s15 = sshll.u32 [#allocation2], 4
      %s16 = int_to_ptr.vmem [resolvable:$true] %s15
      %21 = dma.hbm_to_vmem [thread:$0]  %s0, 256, %s16, [#allocation3], 128, 128, 8
    $region5: #{tpu_custom_call.1} parent=1 // pred_fallthru
      _
    // Predicated region
    $region6: #{tpu_custom_call.1} parent=1 // pred_check
      _
    $region7: #{tpu_custom_call.1} parent=1 // pred_check_branch
      %23 = sbr.rel (0) target = $region9
    $region8: #{tpu_custom_call.1} parent=1 // pred_region
      %s25 = ssub.s32 256, 256
      %26 = vsyncadd [#allocation6], %s25
      %s27 = sshll.u32 [#allocation5], 4
      %s28 = int_to_ptr.vmem [resolvable:$true] %s27
      %33 = dma.hbm_to_vmem [thread:$0]  %s1, 256, %s28, [#allocation6], 128, 128, 8
    $region9: #{tpu_custom_call.1} parent=1 // pred_fallthru
      _
    // Predicated region
    $region10: #{tpu_custom_call.1} parent=1 // pred_check
      _
    $region11: #{tpu_custom_call.1} parent=1 // pred_check_branch
      %35 = sbr.rel (0) target = $region13
    $region12: #{tpu_custom_call.1} parent=1 // pred_region
      %36 = dma.done [#allocation3], 256
    $region13: #{tpu_custom_call.1} parent=1 // pred_fallthru
      _
    // Predicated region
    $region14: #{tpu_custom_call.1} parent=1 // pred_check
      _
    $region15: #{tpu_custom_call.1} parent=1 // pred_check_branch
      %38 = sbr.rel (0) target = $region17
    $region16: #{tpu_custom_call.1} parent=1 // pred_region
      %39 = dma.done [#allocation6], 256
    $region17: #{tpu_custom_call.1} parent=1 // pred_fallthru
      _
    %p40 = scmp.eq.s32.totalorder 0, 0
    // Predicated region
    $region18: #{tpu_custom_call.1} parent=1 // pred_check
      %p41 = pneg %p40
    $region19: #{tpu_custom_call.1} parent=1 // pred_check_branch
      %43 = sbr.rel (%p41) target = $region21
    $region20: #{tpu_custom_call.1} parent=1 // pred_region
      %44 = vst [vmem:[#allocation7] sm:$0xff] 0.0
    $region21: #{tpu_custom_call.1} parent=1 // pred_fallthru
      _
    %v45 = vld [vmem:[#allocation2] sm:$0xff]
    %v46 = vld [vmem:[#allocation2 + $0x8] sm:$0xff]
    %v47 = vld [vmem:[#allocation5] sm:$0xff]
    %v48 = vld [vmem:[#allocation5 + $0x8] sm:$0xff]
    %v49 = vsub.f32 %v45, %v47
    %v50 = vsub.f32 %v46, %v48
    %v51 = vand.u32 2147483647, %v49
    %v52 = vand.u32 2147483647, %v50
    %v53 = vld [vmem:[#allocation7] sm:$0xff]
    %v54 = vadd.f32 %v51, %v52
    %v55 = vadd.f32 %v53, %v54
    %56 = vst [vmem:[#allocation7] sm:$0xff] %v55
    // Predicated region
    $region22: #{tpu_custom_call.1} parent=1 // pred_check
      _
    $region23: #{tpu_custom_call.1} parent=1 // pred_check_branch
      %58 = sbr.rel (0) target = $region25
    $region24: #{tpu_custom_call.1} parent=1 // pred_region
      %s60 = ssub.s32 128, 128
      %61 = vsyncadd [#allocation4], %s60
      %s63 = sshll.u32 [#allocation7], 4
      %s64 = int_to_ptr.vmem [resolvable:$true] %s63
      %66 = dma.vmem_to_hbm [thread:$0]  %s64, 128, %s2, [#allocation4]
    $region25: #{tpu_custom_call.1} parent=1 // pred_fallthru
      _
    // Predicated region
    $region26: #{tpu_custom_call.1} parent=1 // pred_check
      _
    $region27: #{tpu_custom_call.1} parent=1 // pred_check_branch
      %68 = sbr.rel (0) target = $region29
    $region28: #{tpu_custom_call.1} parent=1 // pred_region
      %69 = dma.done [#allocation4], 128
    $region29: #{tpu_custom_call.1} parent=1 // pred_fallthru
      _
    %70 = vsyncpa [#allocation3], 1
    %71 = vsyncpa [#allocation6], 1
    %72 = vsyncpa [#allocation4], 1

</llo_original>
